<compile_context>
chip_gen: v6e
topology: v6e:2x2x1
jax: 0.10.0
libtpu: 0.0.40
codegen_flags: <defaults>
</compile_context>

<pallas_src>
import functools

import jax
import jax.numpy as jnp
from jax.experimental import pallas as pl
from jax.experimental.pallas import tpu as pltpu


def _round_up(n, m):
    return ((n + m - 1) // m) * m


def _cdiv(a, b):
    return (a + b - 1) // b


def _act_kernel(x_ref, o_ref, *, activation):
    x = x_ref[...]
    if activation == "sigmoid":
        # sigmoid(x) * 2 - 1 == tanh(x / 2): one EUP transcendental + one mul.
        # bf16 / f32 compute natively (v6e/v7x have bf16 EUP; keeps the single
        # EUP slot off the critical path at v7x HBM bandwidth); anything else
        # goes through f32.
        if x.dtype == jnp.bfloat16 or x.dtype == jnp.float32:
            half = jnp.asarray(0.5, dtype=x.dtype)
            o_ref[...] = jnp.tanh(x * half).astype(o_ref.dtype)
        else:
            o_ref[...] = jnp.tanh(x.astype(jnp.float32) * 0.5).astype(o_ref.dtype)
    elif activation == "relu":
        # Scalar constant 0: avoids materializing a full-tile zero broadcast
        # per block (JAX does not CSE broadcast_in_dim).
        o_ref[...] = jnp.maximum(x, 0).astype(o_ref.dtype)
    else:
        o_ref[...] = x


_LANE = 128


def _choose_slab(n):
    """Pick (rows, cols, padded_n) for a lane-dense 2D slab.

    cols is always a multiple of 128 and rows a multiple of 8, so every
    vector store is a full-lane unmasked vst. Padding is only added when the
    element count cannot be factored into an (8k, 128m) slab.
    """
    # No-pad path: n already factors as (8k) x cw.
    for cw in (4096, 2048, 1024, 512, 256, _LANE):
        if n % (8 * cw) == 0:
            return n // cw, cw, n
    # Pad path: pad the flat length up to a multiple of 8*cw (cw sized to n).
    for cw in (1024, 512, 256, _LANE):
        if n >= 8 * cw or cw == _LANE:
            padded = _round_up(n, 8 * cw)
            return padded // cw, cw, padded


def identity_forward(x, activation=False):
    """Pallas implementation of Identity.forward."""
    x = jnp.asarray(x)

    # Identity path: no kernel launch, no HBM traffic.
    if activation not in ("sigmoid", "relu"):
        return x
    if x.size == 0:
        return x

    orig_shape = x.shape
    n = x.size
    dtype_bytes = jnp.dtype(x.dtype).itemsize

    # Lane-dense slab (wrapper-side pad/slice instead of ragged masked stores).
    R, C, padded_n = _choose_slab(n)
    flat = x.reshape(-1)
    if padded_n != n:
        flat = jnp.pad(flat, (0, padded_n - n))
    x2 = flat.reshape(R, C)

    # Byte-budgeted tiles: ~4 MiB per block regardless of dtype; rows stay a
    # multiple of the dtype's sublane packing (8 f32 / 16 bf16 / 32 int8).
    sublane = max(8, 32 // max(dtype_bytes, 1))
    tc = min(C, 2048)  # always divides C exactly (C is a power-of-two multiple of 128)
    target_block_bytes = 4 * 1024 * 1024
    tr = max(sublane, (target_block_bytes // (tc * dtype_bytes)) // sublane * sublane)
    tr = min(tr, R)    # R is a multiple of 8 by construction

    # Ensure medium inputs expose >=2 parallel blocks so v7x's two TensorCores
    # both stream (megacore sharding of "parallel" axes); no-op on v5e/v6e.
    total_bytes = padded_n * dtype_bytes
    if (_cdiv(R, tr) * _cdiv(C, tc) == 1 and total_bytes >= (1 << 20)
            and R >= 2 * sublane):
        tr = _round_up(_cdiv(R, 2), sublane)

    grid = (_cdiv(R, tr), _cdiv(C, tc))

    # VMEM limit from the actual working set (double-buffered in + out blocks)
    # plus slack, capped well under v7x's 64 MiB physical VMEM.
    block_bytes = tr * tc * dtype_bytes
    vmem_limit = int(min(48 * 1024 * 1024,
                         max(16 * 1024 * 1024, 4 * block_bytes + 4 * 1024 * 1024)))

    kernel = functools.partial(_act_kernel, activation=activation)

    y2 = pl.pallas_call(
        kernel,
        out_shape=jax.ShapeDtypeStruct((R, C), x.dtype),
        grid_spec=pltpu.PrefetchScalarGridSpec(
            num_scalar_prefetch=0,
            grid=grid,
            in_specs=[pl.BlockSpec((tr, tc), lambda i, j: (i, j))],
            out_specs=pl.BlockSpec((tr, tc), lambda i, j: (i, j)),
        ),
        compiler_params=pltpu.CompilerParams(
            dimension_semantics=("parallel", "parallel"),
            vmem_limit_bytes=vmem_limit,
        ),
    )(x2)

    if padded_n != n:
        return y2.reshape(-1)[:n].reshape(orig_shape)
    return y2.reshape(orig_shape)


if __name__ == "__main__":
    key = jax.random.PRNGKey(0)
    # Small NCHW-like input consistent with typical usage of this module.
    x = jax.random.normal(key, (2, 4, 16, 16), dtype=jnp.float32)

    # identity: short-circuited, returns x unchanged
    y_id = jax.block_until_ready(identity_forward(x, activation=False))
    assert y_id.shape == x.shape and y_id.dtype == x.dtype
    assert jnp.allclose(y_id, x)

    # relu
    y_relu = jax.block_until_ready(identity_forward(x, activation="relu"))
    assert jnp.allclose(y_relu, jnp.maximum(x, 0.0))

    # sigmoid * 2 - 1  (kernel computes tanh(x/2))
    y_sig = jax.block_until_ready(identity_forward(x, activation="sigmoid"))
    assert jnp.allclose(y_sig, jax.nn.sigmoid(x) * 2.0 - 1.0, atol=1e-5)

    # bf16 sigmoid exercises the native-bf16 tanh path
    xb = jax.random.normal(jax.random.PRNGKey(2), (4, 8, 32), dtype=jnp.bfloat16)
    yb = jax.block_until_ready(identity_forward(xb, activation="sigmoid"))
    ref_b = jax.nn.sigmoid(xb.astype(jnp.float32)) * 2.0 - 1.0
    assert yb.dtype == jnp.bfloat16
    assert jnp.allclose(yb.astype(jnp.float32), ref_b, atol=3e-2)

    # ragged / non-128-divisible element count exercises the pad-to-lane-dense path
    xr = jax.random.normal(jax.random.PRNGKey(1), (3, 5, 36), dtype=jnp.float32)
    yr = jax.block_until_ready(identity_forward(xr, activation="relu"))
    assert yr.shape == xr.shape
    assert jnp.allclose(yr, jnp.maximum(xr, 0.0))

    print("KERNEL_OK")
</pallas_src>

<mosaic_0001>
module attributes {stable_mosaic.version = 11 : i64} {
  func.func @_act_kernel(%arg0: i32, %arg1: i32, %arg2: memref<8x256xf32, #tpu.memory_space<vmem>>, %arg3: memref<8x256xf32, #tpu.memory_space<vmem>>) attributes {dimension_semantics = [#tpu.dimension_semantics<parallel>, #tpu.dimension_semantics<parallel>], iteration_bounds = array<i64: 1, 1>, scalar_prefetch = 0 : i64, scratch_operands = 0 : i64, tpu.core_type = #tpu.core_type<tc>, window_params = [{transform_indices = @transform_0, window_bounds = array<i64: 8, 256>}, {transform_indices = @transform_1, window_bounds = array<i64: 8, 256>}]} {
    %c0 = arith.constant 0 : index
    %c0_0 = arith.constant 0 : index
    %0 = vector.load %arg2[%c0, %c0_0] : memref<8x256xf32, #tpu.memory_space<vmem>>, vector<8x256xf32>
    %cst = arith.constant 0.000000e+00 : f32
    %1 = vector.broadcast %cst : f32 to vector<8x256xf32>
    %2 = arith.maximumf %0, %1 : vector<8x256xf32>
    %c0_1 = arith.constant 0 : index
    %c0_2 = arith.constant 0 : index
    %3 = vector.load %arg3[%c0_1, %c0_2] : memref<8x256xf32, #tpu.memory_space<vmem>>, vector<8x256xf32>
    tpu.vector_store %arg3[%c0_1, %c0_2], %2 {strides = array<i32>} : memref<8x256xf32, #tpu.memory_space<vmem>>, vector<8x256xf32>,
    return
  }
  func.func @transform_0(%arg0: i32, %arg1: i32) -> (i32, i32) {
    %c0_i32 = arith.constant 0 : i32
    return %arg0, %arg1 : i32, i32
  }
  func.func @transform_1(%arg0: i32, %arg1: i32) -> (i32, i32) {
    %c0_i32 = arith.constant 0 : i32
    return %arg0, %arg1 : i32, i32
  }
}

</mosaic_0001>

<llo_original>
// kernel: tpu_custom_call.1
$region0: #{tpu_custom_call.1}
  #allocation0 [shape = 'u32[]', space=smem, size = 0x4, offset = 0x4, fixed_abs, tag = 'smem constant byte address 0x4 - core index']
  #allocation1 [shape = 'u32[144,128]{1,0:T(1,128)}', space=vmem, size = 0x12000, scoped, tag = 'internal scratch']
  %s0 = inlined_call_operand.hbm [shape: f32[8,256], index: 0, kind: input, shape index: {}]
  %s1 = inlined_call_operand.hbm [shape: f32[8,256], index: 1, kind: output, shape index: {}]
  %s2 = sld [smem:[#allocation0]]
  $region18: #{tpu_custom_call.1} parent=0
    _
  %s4 = ssub.s32 1, %s2
  %s5 = scalar_select 0, %s4, %s2
  $region1: #{tpu_custom_call.1} parent=0
    #allocation2 [shape = 'u8[8192]{0}', space=vmem, size = 0x2000, scoped, tag = 'input window, operand 0, single buffered']
    #allocation3 [shape = 's32[1]{0}', space=sflag, size = 0x4, scoped, tag = 'scoped memory for tpu_custom_call.1']
    #allocation4 [shape = 's32[1]{0}', space=sflag, size = 0x4, scoped, tag = 'scoped memory for tpu_custom_call.1']
    #allocation5 [shape = 'u8[8192]{0}', space=vmem, size = 0x2000, scoped, tag = 'output window, operand 0, single buffered']
    %6 = vsyncpa [#allocation3], 0
    %7 = vsyncpa [#allocation4], 0
    // Predicated region
    $region2: #{tpu_custom_call.1} parent=1 // pred_check
      _
    $region3: #{tpu_custom_call.1} parent=1 // pred_check_branch
      %9 = sbr.rel (0) target = $region5
    $region4: #{tpu_custom_call.1} parent=1 // pred_region
      %s11 = ssub.s32 256, 256
      %12 = vsyncadd [#allocation3], %s11
      %s14 = sshll.u32 [#allocation2], 4
      %s15 = int_to_ptr.vmem [resolvable:$true] %s14
      %17 = dma.hbm_to_vmem [thread:$0]  %s0, 256, %s15, [#allocation3]
    $region5: #{tpu_custom_call.1} parent=1 // pred_fallthru
      _
    // Predicated region
    $region6: #{tpu_custom_call.1} parent=1 // pred_check
      _
    $region7: #{tpu_custom_call.1} parent=1 // pred_check_branch
      %19 = sbr.rel (0) target = $region9
    $region8: #{tpu_custom_call.1} parent=1 // pred_region
      %20 = dma.done [#allocation3], 256
    $region9: #{tpu_custom_call.1} parent=1 // pred_fallthru
      _
    %v21 = vld [vmem:[#allocation2] sm:$0xff]
    %v22 = vld [vmem:[#allocation2 + $0x8] sm:$0xff]
    %v23 = vmax.f32 %v21, 0.0
    %v24 = vmax.f32 %v22, 0.0
    %25 = vst [vmem:[#allocation5] sm:$0xff] %v23
    %26 = vst [vmem:[#allocation5 + $0x8] sm:$0xff] %v24
    // Predicated region
    $region10: #{tpu_custom_call.1} parent=1 // pred_check
      _
    $region11: #{tpu_custom_call.1} parent=1 // pred_check_branch
      %28 = sbr.rel (0) target = $region13
    $region12: #{tpu_custom_call.1} parent=1 // pred_region
      %s30 = ssub.s32 256, 256
      %31 = vsyncadd [#allocation4], %s30
      %s33 = sshll.u32 [#allocation5], 4
      %s34 = int_to_ptr.vmem [resolvable:$true] %s33
      %36 = dma.vmem_to_hbm [thread:$0]  %s34, 256, %s1, [#allocation4]
    $region13: #{tpu_custom_call.1} parent=1 // pred_fallthru
      _
    // Predicated region
    $region14: #{tpu_custom_call.1} parent=1 // pred_check
      _
    $region15: #{tpu_custom_call.1} parent=1 // pred_check_branch
      %38 = sbr.rel (0) target = $region17
    $region16: #{tpu_custom_call.1} parent=1 // pred_region
      %39 = dma.done [#allocation4], 256
    $region17: #{tpu_custom_call.1} parent=1 // pred_fallthru
      _
    %40 = vsyncpa [#allocation3], 1
    %41 = vsyncpa [#allocation4], 1

</llo_original>
